<compile_context>
chip_gen: v7x
topology: tpu7x:2x2x1
jax: 0.10.0
libtpu: 0.0.40
codegen_flags: <defaults>
</compile_context>

<pallas_src>
import jax
import jax.numpy as jnp
from jax.experimental import pallas as pl
from jax.experimental.pallas import tpu as pltpu

_LANE = 128
_TARGET_TILE_BYTES = 4 * 1024 * 1024        # per-tile budget; x4 buffers ~= 16 MiB resident
_VMEM_LIMIT_BYTES = 32 * 1024 * 1024        # safe on v5e/v6e (128 MiB phys) and v7x (64 MiB)
_MEGACORE_SPLIT_MIN_BYTES = 1 * 1024 * 1024  # only split for megacore if the copy is non-trivial


def _identity_kernel(x_ref, o_ref):
    # Elementwise hot path: copy the VMEM tile through unchanged.
    o_ref[...] = x_ref[...]


def _sublane_multiple(dtype) -> int:
    # Row-tile alignment per dtype packing (f32 -> 8, bf16/f16 -> 16, 8-bit -> 32).
    itemsize = jnp.dtype(dtype).itemsize
    if itemsize >= 4:
        return 8
    if itemsize == 2:
        return 16
    return 32


def _round_up(n: int, m: int) -> int:
    return -(-n // m) * m


def base_module_forward(x: jax.Array) -> jax.Array:
    """Identity forward of BaseModule, executed as a tiled Pallas TPU copy.

    Accepts any tensor (e.g. NCHW); returns it unchanged with the same shape
    and dtype.
    """
    # TODO(synk): BaseModule.forward is abstract (raises NotImplemented); only an
    # identity pass-through is implementable.  For a pure identity the true
    # optimum is simply returning x (or aliasing in/out buffers with donation);
    # the Pallas copy is kept so a real kernel is exercised, and x must stay
    # live for the correctness check, so no input_output_aliases is used.
    if x.ndim == 0 or x.size == 0:
        return x

    orig_shape = x.shape
    dtype = x.dtype
    total = x.size
    itemsize = jnp.dtype(dtype).itemsize
    sub = _sublane_multiple(dtype)

    # ---- choose a 2-D layout with a lane-dense last dim whenever possible ----
    if total % _LANE == 0:
        # Fully flatten and fold onto exactly 128 lanes: unmasked full-lane
        # stores, contiguous DMA bursts, independent of the original last dim.
        cols = _LANE
        rows = total // _LANE
    else:
        # Ragged fallback: keep the original last dim on lanes (block == full
        # dim or a multiple of 128, so it stays legal; stores may be masked).
        cols = orig_shape[-1]
        rows = total // cols

    x2 = x.reshape(rows, cols)   # contiguous reshape: no data movement in XLA

    # ---- column tiling (only needed if a single sub-row stripe is too big) ----
    if cols * sub * itemsize <= _TARGET_TILE_BYTES:
        tile_cols = cols
    else:
        tile_cols = max(_LANE,
                        (_TARGET_TILE_BYTES // (sub * itemsize)) // _LANE * _LANE)
    col_steps = pl.cdiv(cols, tile_cols)

    # ---- bytes-based row tiling (target a few MiB per tile) -------------------
    tile_rows = (_TARGET_TILE_BYTES // (tile_cols * itemsize)) // sub * sub
    tile_rows = max(sub, tile_rows)
    if tile_rows >= rows:
        if (col_steps == 1 and rows >= 2 * sub
                and rows * cols * itemsize >= _MEGACORE_SPLIT_MIN_BYTES):
            # Whole array would be a single grid step but the copy is large:
            # split the rows in two so both TensorCores get work on v7x.
            tile_rows = _round_up(-(-rows // 2), sub)
        else:
            tile_rows = rows            # block == full dim: always legal
    row_steps = pl.cdiv(rows, tile_rows)

    # ---- grid: 1-D in the common (lane-dense) path, 2-D only if cols tiled ----
    if col_steps == 1:
        grid = (row_steps,)
        in_spec = pl.BlockSpec((tile_rows, cols), lambda i: (i, 0))
        out_spec = pl.BlockSpec((tile_rows, cols), lambda i: (i, 0))
        dim_sem = ("parallel",)
    else:
        grid = (row_steps, col_steps)
        in_spec = pl.BlockSpec((tile_rows, tile_cols), lambda i, j: (i, j))
        out_spec = pl.BlockSpec((tile_rows, tile_cols), lambda i, j: (i, j))
        dim_sem = ("parallel", "parallel")

    out2 = pl.pallas_call(
        _identity_kernel,
        out_shape=jax.ShapeDtypeStruct((rows, cols), dtype),
        grid_spec=pltpu.PrefetchScalarGridSpec(
            num_scalar_prefetch=0,
            grid=grid,
            in_specs=[in_spec],
            out_specs=out_spec,
        ),
        compiler_params=pltpu.CompilerParams(
            dimension_semantics=dim_sem,
            vmem_limit_bytes=_VMEM_LIMIT_BYTES,
        ),
    )(x2)

    return out2.reshape(orig_shape)


if __name__ == "__main__":
    key = jax.random.PRNGKey(0)
    # Small NCHW input consistent with a characterization module's typical use.
    x = jax.random.normal(key, (2, 4, 16, 16), dtype=jnp.float32)

    y = base_module_forward(x)
    jax.block_until_ready(y)

    assert y.shape == x.shape and y.dtype == x.dtype
    assert bool(jnp.all(y == x))
    print("KERNEL_OK")
</pallas_src>

<mosaic_0001>
module attributes {stable_mosaic.version = 11 : i64} {
  func.func @_identity_kernel(%arg0: i32, %arg1: memref<16x128xf32, #tpu.memory_space<vmem>>, %arg2: memref<16x128xf32, #tpu.memory_space<vmem>>) attributes {dimension_semantics = [#tpu.dimension_semantics<parallel>], iteration_bounds = array<i64: 1>, scalar_prefetch = 0 : i64, scratch_operands = 0 : i64, tpu.core_type = #tpu.core_type<tc>, window_params = [{transform_indices = @transform_0, window_bounds = array<i64: 16, 128>}, {transform_indices = @transform_1, window_bounds = array<i64: 16, 128>}]} {
    %c0 = arith.constant 0 : index
    %c0_0 = arith.constant 0 : index
    %0 = vector.load %arg1[%c0, %c0_0] : memref<16x128xf32, #tpu.memory_space<vmem>>, vector<16x128xf32>
    %c0_1 = arith.constant 0 : index
    %c0_2 = arith.constant 0 : index
    %1 = vector.load %arg2[%c0_1, %c0_2] : memref<16x128xf32, #tpu.memory_space<vmem>>, vector<16x128xf32>
    tpu.vector_store %arg2[%c0_1, %c0_2], %0 {strides = array<i32>} : memref<16x128xf32, #tpu.memory_space<vmem>>, vector<16x128xf32>,
    return
  }
  func.func @transform_0(%arg0: i32) -> (i32, i32) {
    %c0_i32 = arith.constant 0 : i32
    %c0_i32_0 = arith.constant 0 : i32
    return %arg0, %c0_i32 : i32, i32
  }
  func.func @transform_1(%arg0: i32) -> (i32, i32) {
    %c0_i32 = arith.constant 0 : i32
    %c0_i32_0 = arith.constant 0 : i32
    return %arg0, %c0_i32 : i32, i32
  }
}

</mosaic_0001>

<llo_original>
// kernel: tpu_custom_call.1
$region0: #{tpu_custom_call.1}
  #allocation0 [shape = 'u32[]', space=smem, size = 0x4, offset = 0x4, fixed_abs, tag = 'smem constant byte address 0x4 - core index']
  #allocation1 [shape = 'u32[144,128]{1,0:T(1,128)}', space=vmem, size = 0x12000, scoped, tag = 'internal scratch']
  %s0 = inlined_call_operand.hbm [shape: f32[16,128], index: 0, kind: input, shape index: {}]
  %s1 = inlined_call_operand.hbm [shape: f32[16,128], index: 1, kind: output, shape index: {}]
  %s2 = sld [smem:[#allocation0]]
  $region18: #{tpu_custom_call.1} parent=0
    _
  %s4 = ssub.s32 1, %s2
  %s5 = scalar_select 0, %s4, %s2
  $region1: #{tpu_custom_call.1} parent=0
    #allocation2 [shape = 'u8[8192]{0}', space=vmem, size = 0x2000, scoped, tag = 'input window, operand 0, single buffered']
    #allocation3 [shape = 's32[1]{0}', space=sflag, size = 0x4, scoped, tag = 'scoped memory for tpu_custom_call.1']
    #allocation4 [shape = 's32[1]{0}', space=sflag, size = 0x4, scoped, tag = 'scoped memory for tpu_custom_call.1']
    #allocation5 [shape = 'u8[8192]{0}', space=vmem, size = 0x2000, scoped, tag = 'output window, operand 0, single buffered']
    %6 = vsyncpa [#allocation3], 0
    %7 = vsyncpa [#allocation4], 0
    // Predicated region
    $region2: #{tpu_custom_call.1} parent=1 // pred_check
      _
    $region3: #{tpu_custom_call.1} parent=1 // pred_check_branch
      %9 = sbr.rel (0) target = $region5
    $region4: #{tpu_custom_call.1} parent=1 // pred_region
      %s11 = ssub.s32 256, 256
      %12 = vsyncadd [#allocation3], %s11
      %s13 = sshll.u32 [#allocation2], 4
      %s14 = int_to_ptr.vmem [resolvable:$true] %s13
      %19 = dma.hbm_to_vmem [thread:$0]  %s0, 256, %s14, [#allocation3], 128, 128, 8
    $region5: #{tpu_custom_call.1} parent=1 // pred_fallthru
      _
    // Predicated region
    $region6: #{tpu_custom_call.1} parent=1 // pred_check
      _
    $region7: #{tpu_custom_call.1} parent=1 // pred_check_branch
      %21 = sbr.rel (0) target = $region9
    $region8: #{tpu_custom_call.1} parent=1 // pred_region
      %22 = dma.done [#allocation3], 256
    $region9: #{tpu_custom_call.1} parent=1 // pred_fallthru
      _
    %v23 = vld [vmem:[#allocation2] sm:$0xff]
    %v24 = vld [vmem:[#allocation2 + $0x8] sm:$0xff]
    %25 = vst [vmem:[#allocation5] sm:$0xff] %v23
    %26 = vst [vmem:[#allocation5 + $0x8] sm:$0xff] %v24
    // Predicated region
    $region10: #{tpu_custom_call.1} parent=1 // pred_check
      _
    $region11: #{tpu_custom_call.1} parent=1 // pred_check_branch
      %28 = sbr.rel (0) target = $region13
    $region12: #{tpu_custom_call.1} parent=1 // pred_region
      %s30 = ssub.s32 256, 256
      %31 = vsyncadd [#allocation4], %s30
      %s32 = sshll.u32 [#allocation5], 4
      %s33 = int_to_ptr.vmem [resolvable:$true] %s32
      %38 = dma.vmem_to_hbm [thread:$0]  %s33, 256, %s1, [#allocation4], 128, 128, 8
    $region13: #{tpu_custom_call.1} parent=1 // pred_fallthru
      _
    // Predicated region
    $region14: #{tpu_custom_call.1} parent=1 // pred_check
      _
    $region15: #{tpu_custom_call.1} parent=1 // pred_check_branch
      %40 = sbr.rel (0) target = $region17
    $region16: #{tpu_custom_call.1} parent=1 // pred_region
      %41 = dma.done [#allocation4], 256
    $region17: #{tpu_custom_call.1} parent=1 // pred_fallthru
      _
    %42 = vsyncpa [#allocation3], 1
    %43 = vsyncpa [#allocation4], 1

</llo_original>
